<compile_context>
chip_gen: v5e
topology: v5e:2x2
jax: 0.10.0
libtpu: 0.0.40
codegen_flags: <defaults>
</compile_context>

<pallas_src>
import math

import jax
import jax.numpy as jnp
from jax import lax
from jax.experimental import pallas as pl
from jax.experimental.pallas import tpu as pltpu


def _noun_attention_kernel(dec_ref, enc_ref, wq_ref, bq_ref, wk_ref, bk_ref,
                           out_ref, k_ref):
    # dec_ref: (NB, tq, D) f32     enc_ref: (NB, Sk_pad, D) f32
    # wq_ref/wk_ref: (D, D) bf16 in PyTorch (out, in) layout (wq pre-scaled)
    # bq_ref/bk_ref: (1, D) f32 (bq pre-scaled)
    # out_ref: (NB, tq, Sk_pad) f32
    # k_ref:  (NB, Sk_pad, D) bf16 scratch (K cache, reused across Sq tiles)
    nb, tq, d = dec_ref.shape
    _, sk_pad, _ = enc_ref.shape
    s = pl.program_id(1)

    # Project K once per batch block; reuse across all Sq tiles.
    @pl.when(s == 0)
    def _():
        xk = enc_ref[...].reshape(nb * sk_pad, d).astype(jnp.bfloat16)
        k = lax.dot_general(
            xk, wk_ref[...],
            dimension_numbers=(((1,), (1,)), ((), ())),   # contract W dim 1
            preferred_element_type=jnp.float32) + bk_ref[...]
        k_ref[...] = k.reshape(nb, sk_pad, d).astype(k_ref.dtype)

    # Q projection: (NB*tq, D) x (D, D)^T, f32 accumulation; 1/sqrt(D) is
    # already folded into wq/bq.
    xq = dec_ref[...].reshape(nb * tq, d).astype(jnp.bfloat16)
    q = lax.dot_general(
        xq, wq_ref[...],
        dimension_numbers=(((1,), (1,)), ((), ())),
        preferred_element_type=jnp.float32) + bq_ref[...]
    q = q.reshape(nb, tq, d).astype(jnp.bfloat16)

    # Batched q . k^T: contract last dims of both operands, batch dim 0
    # (no transposed copy of k is materialized).
    out_ref[...] = lax.dot_general(
        q, k_ref[...],
        dimension_numbers=(((2,), (2,)), ((0,), (0,))),
        preferred_element_type=jnp.float32).astype(out_ref.dtype)


def _choose_sq_tile(sq, max_tile=512):
    """Full Sq per step when small; otherwise a divisor of Sq (mult. of 8)."""
    if sq <= max_tile:
        return sq
    for t in range(max_tile, 7, -1):
        if sq % t == 0 and t % 8 == 0:
            return t
    return sq


def _choose_batch_block(b, tq, sk_pad, d, vmem_budget=20 << 20):
    """Largest useful divisor of B whose per-step blocks fit comfortably in
    the scoped-VMEM limit (double-buffered inputs/outputs + K cache)."""
    def step_bytes(nb):
        dec = 2 * nb * tq * d * 4            # double-buffered f32 input block
        enc = 2 * nb * sk_pad * d * 4
        out = 2 * nb * tq * sk_pad * 4       # double-buffered f32 output block
        wts = 2 * (2 * d * d * 2 + 2 * d * 4)
        kscr = nb * sk_pad * d * 2           # K cache scratch (bf16, single)
        live = nb * (tq + sk_pad) * d * 6 + nb * tq * sk_pad * 4
        return dec + enc + out + wts + kscr + live

    divisors = [x for x in range(1, b + 1) if b % x == 0]
    fitting = [x for x in divisors if step_bytes(x) <= vmem_budget]
    if not fitting:
        return 1
    for x in fitting:
        if x * tq >= 256:        # enough M rows to fill an MXU tile
            return x
    return fitting[-1]


def noun_attention(x_dec, x_enc, wq, bq, wk, bk):
    """NounAttention forward.

    x_dec: [B, Sq, D] decoder hidden states (last_hidden_state)
    x_enc: [B, Sk, D] encoder hidden states (encoder_last_hidden_state)
    wq, wk: [D, D] in PyTorch Linear layout (out, in); bq, bk: [D].
    Returns noun_weight: [B, Sq, Sk] (float32).
    """
    B, Sq, D = x_dec.shape
    _, Sk, _ = x_enc.shape
    inv_sqrt_d = 1.0 / math.sqrt(D)

    # Fold the 1/sqrt(D) scale into the (tiny) query weight/bias once; keep
    # PyTorch (out, in) layout (no transpose), cast weights to bf16 for MXU.
    wq_c = (jnp.asarray(wq, jnp.float32) * inv_sqrt_d).astype(jnp.bfloat16)
    bq_c = (jnp.asarray(bq, jnp.float32) * inv_sqrt_d).reshape(1, D)
    wk_c = jnp.asarray(wk, jnp.float32).astype(jnp.bfloat16)
    bk_c = jnp.asarray(bk, jnp.float32).reshape(1, D)

    x_dec = jnp.asarray(x_dec, jnp.float32)
    x_enc = jnp.asarray(x_enc, jnp.float32)

    # Lane-dense output stores: pad Sk to a multiple of 128; padded key rows
    # only create extra output columns, which are sliced off below.
    LANE = 128
    sk_pad = ((Sk + LANE - 1) // LANE) * LANE
    if sk_pad != Sk:
        x_enc = jnp.pad(x_enc, ((0, 0), (0, sk_pad - Sk), (0, 0)))

    tq = _choose_sq_tile(Sq)
    nb = _choose_batch_block(B, tq, sk_pad, D)
    grid = (B // nb, Sq // tq)

    out = pl.pallas_call(
        _noun_attention_kernel,
        out_shape=jax.ShapeDtypeStruct((B, Sq, sk_pad), jnp.float32),
        grid_spec=pltpu.PrefetchScalarGridSpec(
            num_scalar_prefetch=0,
            grid=grid,
            in_specs=[
                pl.BlockSpec((nb, tq, D), lambda b, s: (b, s, 0)),
                pl.BlockSpec((nb, sk_pad, D), lambda b, s: (b, 0, 0)),
                pl.BlockSpec((D, D), lambda b, s: (0, 0)),
                pl.BlockSpec((1, D), lambda b, s: (0, 0)),
                pl.BlockSpec((D, D), lambda b, s: (0, 0)),
                pl.BlockSpec((1, D), lambda b, s: (0, 0)),
            ],
            out_specs=pl.BlockSpec((nb, tq, sk_pad), lambda b, s: (b, s, 0)),
            scratch_shapes=[pltpu.VMEM((nb, sk_pad, D), jnp.bfloat16)],
        ),
        compiler_params=pltpu.CompilerParams(
            # K cache carries state across Sq tiles -> Sq axis is "arbitrary".
            dimension_semantics=("parallel", "arbitrary"),
            vmem_limit_bytes=32 << 20),
    )(x_dec, x_enc, wq_c, bq_c, wk_c, bk_c)

    if sk_pad != Sk:
        out = out[:, :, :Sk]
    return out


def noun_attention_ref(x_dec, x_enc, wq, bq, wk, bk):
    D = x_dec.shape[-1]
    q = (jnp.einsum("bsd,od->bso", x_dec, wq) + bq) / math.sqrt(D)
    k = jnp.einsum("bsd,od->bso", x_enc, wk) + bk
    return jnp.einsum("bqd,bkd->bqk", q, k)


if __name__ == "__main__":
    key = jax.random.PRNGKey(0)
    B, Sq, Sk, D = 2, 8, 8, 32  # small shapes; d_model = 32

    k1, k2, k3, k4, k5, k6 = jax.random.split(key, 6)
    x_dec = jax.random.normal(k1, (B, Sq, D), jnp.float32)   # last_hidden_state
    x_enc = jax.random.normal(k2, (B, Sk, D), jnp.float32)   # encoder_last_hidden_state

    # Deterministic "Linear" params (PyTorch layout: W is (out, in), b is (out,))
    bound = 1.0 / math.sqrt(D)
    wq = jax.random.uniform(k3, (D, D), jnp.float32, -bound, bound)
    bq = jax.random.uniform(k4, (D,), jnp.float32, -bound, bound)
    wk = jax.random.uniform(k5, (D, D), jnp.float32, -bound, bound)
    bk = jax.random.uniform(k6, (D,), jnp.float32, -bound, bound)

    out = noun_attention(x_dec, x_enc, wq, bq, wk, bk)
    jax.block_until_ready(out)

    ref = noun_attention_ref(x_dec, x_enc, wq, bq, wk, bk)
    assert out.shape == (B, Sq, Sk)
    # bf16 MXU inputs with f32 accumulation -> tolerance reflects bf16 rounding.
    assert jnp.allclose(out, ref, atol=5e-2, rtol=5e-2), "mismatch vs reference"

    print("KERNEL_OK")
</pallas_src>

<mosaic_0001>
module attributes {stable_mosaic.version = 11 : i64} {
  func.func @_noun_attention_kernel(%arg0: i32, %arg1: i32, %arg2: memref<2x8x32xf32, #tpu.memory_space<vmem>>, %arg3: memref<2x128x32xf32, #tpu.memory_space<vmem>>, %arg4: memref<32x32xbf16, #tpu.memory_space<vmem>>, %arg5: memref<1x32xf32, #tpu.memory_space<vmem>>, %arg6: memref<32x32xbf16, #tpu.memory_space<vmem>>, %arg7: memref<1x32xf32, #tpu.memory_space<vmem>>, %arg8: memref<2x8x128xf32, #tpu.memory_space<vmem>>, %arg9: memref<2x128x32xbf16, #tpu.memory_space<vmem>>) attributes {dimension_semantics = [#tpu.dimension_semantics<parallel>, #tpu.dimension_semantics<arbitrary>], iteration_bounds = array<i64: 1, 1>, scalar_prefetch = 0 : i64, scratch_operands = 1 : i64, tpu.core_type = #tpu.core_type<tc>, window_params = [{transform_indices = @transform_0, window_bounds = array<i64: 2, 8, 32>}, {transform_indices = @transform_1, window_bounds = array<i64: 2, 128, 32>}, {pipeline_mode = #tpu.pipeline_mode<synchronous>, transform_indices = @transform_2, window_bounds = array<i64: 32, 32>}, {pipeline_mode = #tpu.pipeline_mode<synchronous>, transform_indices = @transform_3, window_bounds = array<i64: 1, 32>}, {pipeline_mode = #tpu.pipeline_mode<synchronous>, transform_indices = @transform_4, window_bounds = array<i64: 32, 32>}, {pipeline_mode = #tpu.pipeline_mode<synchronous>, transform_indices = @transform_5, window_bounds = array<i64: 1, 32>}, {transform_indices = @transform_6, window_bounds = array<i64: 2, 8, 128>}]} {
    %c0_i32 = arith.constant 0 : i32
    %0 = arith.cmpi eq, %arg1, %c0_i32 : i32
    %1 = arith.extui %0 : i1 to i32
    %c0_i32_0 = arith.constant 0 : i32
    %2 = arith.cmpi ne, %1, %c0_i32_0 : i32
    scf.if %2 {
      %c0_14 = arith.constant 0 : index
      %c0_15 = arith.constant 0 : index
      %c0_16 = arith.constant 0 : index
      %16 = vector.load %arg3[%c0_14, %c0_15, %c0_16] : memref<2x128x32xf32, #tpu.memory_space<vmem>>, vector<2x128x32xf32>
      %17 = vector.shape_cast %16 : vector<2x128x32xf32> to vector<256x32xf32>
      %18 = arith.truncf %17 : vector<256x32xf32> to vector<256x32xbf16>
      %c0_17 = arith.constant 0 : index
      %c0_18 = arith.constant 0 : index
      %19 = vector.load %arg6[%c0_17, %c0_18] : memref<32x32xbf16, #tpu.memory_space<vmem>>, vector<32x32xbf16>
      %cst_19 = arith.constant dense<0.000000e+00> : vector<256x32xf32>
      %20 = tpu.matmul %18, %19, %cst_19 {dimension_numbers = #tpu.dot_dimension_numbers<[1], [1], [0], [0], [0, 0, 1, 0], [], []>} : vector<256x32xbf16>, vector<32x32xbf16>, vector<256x32xf32> -> vector<256x32xf32>
      %c0_20 = arith.constant 0 : index
      %c0_21 = arith.constant 0 : index
      %21 = vector.load %arg7[%c0_20, %c0_21] : memref<1x32xf32, #tpu.memory_space<vmem>>, vector<1x32xf32>
      %22 = vector.broadcast %21 : vector<1x32xf32> to vector<256x32xf32>
      %23 = arith.addf %20, %22 : vector<256x32xf32>
      %24 = vector.shape_cast %23 : vector<256x32xf32> to vector<2x128x32xf32>
      %25 = arith.truncf %24 : vector<2x128x32xf32> to vector<2x128x32xbf16>
      %c0_22 = arith.constant 0 : index
      %c0_23 = arith.constant 0 : index
      %c0_24 = arith.constant 0 : index
      %26 = vector.load %arg9[%c0_22, %c0_23, %c0_24] : memref<2x128x32xbf16, #tpu.memory_space<vmem>>, vector<2x128x32xbf16>
      tpu.vector_store %arg9[%c0_22, %c0_23, %c0_24], %25 {strides = array<i32>} : memref<2x128x32xbf16, #tpu.memory_space<vmem>>, vector<2x128x32xbf16>,
    } else {
    }
    %c0 = arith.constant 0 : index
    %c0_1 = arith.constant 0 : index
    %c0_2 = arith.constant 0 : index
    %3 = vector.load %arg2[%c0, %c0_1, %c0_2] : memref<2x8x32xf32, #tpu.memory_space<vmem>>, vector<2x8x32xf32>
    %4 = vector.shape_cast %3 : vector<2x8x32xf32> to vector<16x32xf32>
    %5 = arith.truncf %4 : vector<16x32xf32> to vector<16x32xbf16>
    %c0_3 = arith.constant 0 : index
    %c0_4 = arith.constant 0 : index
    %6 = vector.load %arg4[%c0_3, %c0_4] : memref<32x32xbf16, #tpu.memory_space<vmem>>, vector<32x32xbf16>
    %cst = arith.constant dense<0.000000e+00> : vector<16x32xf32>
    %7 = tpu.matmul %5, %6, %cst {dimension_numbers = #tpu.dot_dimension_numbers<[1], [1], [0], [0], [0, 0, 1, 0], [], []>} : vector<16x32xbf16>, vector<32x32xbf16>, vector<16x32xf32> -> vector<16x32xf32>
    %c0_5 = arith.constant 0 : index
    %c0_6 = arith.constant 0 : index
    %8 = vector.load %arg5[%c0_5, %c0_6] : memref<1x32xf32, #tpu.memory_space<vmem>>, vector<1x32xf32>
    %9 = vector.broadcast %8 : vector<1x32xf32> to vector<16x32xf32>
    %10 = arith.addf %7, %9 : vector<16x32xf32>
    %11 = vector.shape_cast %10 : vector<16x32xf32> to vector<2x8x32xf32>
    %12 = arith.truncf %11 : vector<2x8x32xf32> to vector<2x8x32xbf16>
    %c0_7 = arith.constant 0 : index
    %c0_8 = arith.constant 0 : index
    %c0_9 = arith.constant 0 : index
    %13 = vector.load %arg9[%c0_7, %c0_8, %c0_9] : memref<2x128x32xbf16, #tpu.memory_space<vmem>>, vector<2x128x32xbf16>
    %cst_10 = arith.constant dense<0.000000e+00> : vector<2x8x128xf32>
    %14 = tpu.matmul %12, %13, %cst_10 {dimension_numbers = #tpu.dot_dimension_numbers<[2], [2], [1], [1], [0, 0, 0, 1, 1, 1], [0], [0]>} : vector<2x8x32xbf16>, vector<2x128x32xbf16>, vector<2x8x128xf32> -> vector<2x8x128xf32>
    %c0_11 = arith.constant 0 : index
    %c0_12 = arith.constant 0 : index
    %c0_13 = arith.constant 0 : index
    %15 = vector.load %arg8[%c0_11, %c0_12, %c0_13] : memref<2x8x128xf32, #tpu.memory_space<vmem>>, vector<2x8x128xf32>
    tpu.vector_store %arg8[%c0_11, %c0_12, %c0_13], %14 {strides = array<i32>} : memref<2x8x128xf32, #tpu.memory_space<vmem>>, vector<2x8x128xf32>,
    return
  }
  func.func @transform_0(%arg0: i32, %arg1: i32) -> (i32, i32, i32) {
    %c0_i32 = arith.constant 0 : i32
    %c0_i32_0 = arith.constant 0 : i32
    return %arg0, %arg1, %c0_i32 : i32, i32, i32
  }
  func.func @transform_1(%arg0: i32, %arg1: i32) -> (i32, i32, i32) {
    %c0_i32 = arith.constant 0 : i32
    %c0_i32_0 = arith.constant 0 : i32
    %c0_i32_1 = arith.constant 0 : i32
    return %arg0, %c0_i32, %c0_i32_0 : i32, i32, i32
  }
  func.func @transform_2(%arg0: i32, %arg1: i32) -> (i32, i32) {
    %c0_i32 = arith.constant 0 : i32
    %c0_i32_0 = arith.constant 0 : i32
    %c0_i32_1 = arith.constant 0 : i32
    return %c0_i32, %c0_i32_0 : i32, i32
  }
  func.func @transform_3(%arg0: i32, %arg1: i32) -> (i32, i32) {
    %c0_i32 = arith.constant 0 : i32
    %c0_i32_0 = arith.constant 0 : i32
    %c0_i32_1 = arith.constant 0 : i32
    return %c0_i32, %c0_i32_0 : i32, i32
  }
  func.func @transform_4(%arg0: i32, %arg1: i32) -> (i32, i32) {
    %c0_i32 = arith.constant 0 : i32
    %c0_i32_0 = arith.constant 0 : i32
    %c0_i32_1 = arith.constant 0 : i32
    return %c0_i32, %c0_i32_0 : i32, i32
  }
  func.func @transform_5(%arg0: i32, %arg1: i32) -> (i32, i32) {
    %c0_i32 = arith.constant 0 : i32
    %c0_i32_0 = arith.constant 0 : i32
    %c0_i32_1 = arith.constant 0 : i32
    return %c0_i32, %c0_i32_0 : i32, i32
  }
  func.func @transform_6(%arg0: i32, %arg1: i32) -> (i32, i32, i32) {
    %c0_i32 = arith.constant 0 : i32
    %c0_i32_0 = arith.constant 0 : i32
    return %arg0, %arg1, %c0_i32 : i32, i32, i32
  }
}

</mosaic_0001>

<llo_original>
// kernel: tpu_custom_call.1
$region0: #{tpu_custom_call.1}
  #allocation0 [shape = 'u32[]', space=smem, size = 0x4, offset = 0x4, fixed_abs, tag = 'smem constant byte address 0x4 - core index']
  #allocation1 [shape = 'u32[72,128]{1,0:T(1,128)}', space=vmem, size = 0x9000, scoped, tag = 'internal scratch']
  #allocation2 [shape = 'bf16[2,128,32]{2,1,0:T(8,128)(2,1)}', space=vmem, size = 0x10000, scoped, tag = 'scratch operand']
  %s0 = inlined_call_operand.vmem [shape: f32[2,8,32], index: 0, kind: input, shape index: {}]
  %s1 = inlined_call_operand.vmem [shape: f32[2,128,32], index: 1, kind: input, shape index: {}]
  %s2 = inlined_call_operand.vmem [shape: bf16[32,32], index: 2, kind: input, shape index: {}]
  %s3 = inlined_call_operand.vmem [shape: f32[1,32], index: 3, kind: input, shape index: {}]
  %s4 = inlined_call_operand.vmem [shape: bf16[32,32], index: 4, kind: input, shape index: {}]
  %s5 = inlined_call_operand.vmem [shape: f32[1,32], index: 5, kind: input, shape index: {}]
  %s6 = inlined_call_operand.hbm [shape: f32[2,8,128], index: 6, kind: output, shape index: {}]
  %s7 = sld [smem:[#allocation0]]
  $region38: #{tpu_custom_call.1} parent=0
    _
  %s9 = ssub.s32 1, %s7
  %s10 = scalar_select 0, %s9, %s7
  $region1: #{tpu_custom_call.1} parent=0
    #allocation3 [shape = 'u8[8192]{0}', space=vmem, size = 0x2000, scoped, tag = 'output window, operand 0, single buffered']
    #allocation4 [shape = 's32[1]{0}', space=sflag, size = 0x4, scoped, tag = 'scoped memory for tpu_custom_call.1']
    %11 = vsyncpa [#allocation4], 0
    // Predicated region
    $region2: #{tpu_custom_call.1} parent=1 // pred_check
      _
    $region3: #{tpu_custom_call.1} parent=1 // pred_check_branch
      %13 = sbr.rel (0) target = $region5
    $region4: #{tpu_custom_call.1} parent=1 // pred_region
      _
    $region5: #{tpu_custom_call.1} parent=1 // pred_fallthru
      _
    // Predicated region
    $region6: #{tpu_custom_call.1} parent=1 // pred_check
      _
    $region7: #{tpu_custom_call.1} parent=1 // pred_check_branch
      %15 = sbr.rel (0) target = $region9
    $region8: #{tpu_custom_call.1} parent=1 // pred_region
      _
    $region9: #{tpu_custom_call.1} parent=1 // pred_fallthru
      _
    // Predicated region
    $region10: #{tpu_custom_call.1} parent=1 // pred_check
      _
    $region11: #{tpu_custom_call.1} parent=1 // pred_check_branch
      %17 = sbr.rel (0) target = $region13
    $region12: #{tpu_custom_call.1} parent=1 // pred_region
      _
    $region13: #{tpu_custom_call.1} parent=1 // pred_fallthru
      _
    // Predicated region
    $region14: #{tpu_custom_call.1} parent=1 // pred_check
      _
    $region15: #{tpu_custom_call.1} parent=1 // pred_check_branch
      %19 = sbr.rel (0) target = $region17
    $region16: #{tpu_custom_call.1} parent=1 // pred_region
      _
    $region17: #{tpu_custom_call.1} parent=1 // pred_fallthru
      _
    // Predicated region
    $region18: #{tpu_custom_call.1} parent=1 // pred_check
      _
    $region19: #{tpu_custom_call.1} parent=1 // pred_check_branch
      %21 = sbr.rel (0) target = $region21
    $region20: #{tpu_custom_call.1} parent=1 // pred_region
      _
    $region21: #{tpu_custom_call.1} parent=1 // pred_fallthru
      _
    // Predicated region
    $region22: #{tpu_custom_call.1} parent=1 // pred_check
      _
    $region23: #{tpu_custom_call.1} parent=1 // pred_check_branch
      %23 = sbr.rel (0) target = $region25
    $region24: #{tpu_custom_call.1} parent=1 // pred_region
      _
    $region25: #{tpu_custom_call.1} parent=1 // pred_fallthru
      _
    %p25 = scmp.eq.s32.totalorder 0, 0
    // Predicated region
    $region26: #{tpu_custom_call.1} parent=1 // pred_check
      %p26 = pneg %p25
    $region27: #{tpu_custom_call.1} parent=1 // pred_check_branch
      %28 = sbr.rel (%p26) target = $region29
    $region28: #{tpu_custom_call.1} parent=1 // pred_region
      %v29 = vld [vmem:[%s1] sm:$0xff]
      %v30 = vld [vmem:[%s1 + $0x8] sm:$0xff]
      %v31 = vld [vmem:[%s1 + $0x10] sm:$0xff]
      %v32 = vld [vmem:[%s1 + $0x18] sm:$0xff]
      %v33 = vld [vmem:[%s1 + $0x20] sm:$0xff]
      %v34 = vld [vmem:[%s1 + $0x28] sm:$0xff]
      %v35 = vld [vmem:[%s1 + $0x30] sm:$0xff]
      %v36 = vld [vmem:[%s1 + $0x38] sm:$0xff]
      %v37 = vld [vmem:[%s1 + $0x40] sm:$0xff]
      %v38 = vld [vmem:[%s1 + $0x48] sm:$0xff]
      %v39 = vld [vmem:[%s1 + $0x50] sm:$0xff]
      %v40 = vld [vmem:[%s1 + $0x58] sm:$0xff]
      %v41 = vld [vmem:[%s1 + $0x60] sm:$0xff]
      %v42 = vld [vmem:[%s1 + $0x68] sm:$0xff]
      %v43 = vld [vmem:[%s1 + $0x70] sm:$0xff]
      %v44 = vld [vmem:[%s1 + $0x78] sm:$0xff]
      %v45 = vld [vmem:[%s1 + $0x80] sm:$0xff]
      %v46 = vld [vmem:[%s1 + $0x88] sm:$0xff]
      %v47 = vld [vmem:[%s1 + $0x90] sm:$0xff]
      %v48 = vld [vmem:[%s1 + $0x98] sm:$0xff]
      %v49 = vld [vmem:[%s1 + $0xa0] sm:$0xff]
      %v50 = vld [vmem:[%s1 + $0xa8] sm:$0xff]
      %v51 = vld [vmem:[%s1 + $0xb0] sm:$0xff]
      %v52 = vld [vmem:[%s1 + $0xb8] sm:$0xff]
      %v53 = vld [vmem:[%s1 + $0xc0] sm:$0xff]
      %v54 = vld [vmem:[%s1 + $0xc8] sm:$0xff]
      %v55 = vld [vmem:[%s1 + $0xd0] sm:$0xff]
      %v56 = vld [vmem:[%s1 + $0xd8] sm:$0xff]
      %v57 = vld [vmem:[%s1 + $0xe0] sm:$0xff]
      %v58 = vld [vmem:[%s1 + $0xe8] sm:$0xff]
      %v59 = vld [vmem:[%s1 + $0xf0] sm:$0xff]
      %v60 = vld [vmem:[%s1 + $0xf8] sm:$0xff]
      %v61 = vpack.c.bf16 %v30, %v29
      %v62 = vpack.c.bf16 %v32, %v31
      %v63 = vpack.c.bf16 %v34, %v33
      %v64 = vpack.c.bf16 %v36, %v35
      %v65 = vpack.c.bf16 %v38, %v37
      %v66 = vpack.c.bf16 %v40, %v39
      %v67 = vpack.c.bf16 %v42, %v41
      %v68 = vpack.c.bf16 %v44, %v43
      %v69 = vpack.c.bf16 %v46, %v45
      %v70 = vpack.c.bf16 %v48, %v47
      %v71 = vpack.c.bf16 %v50, %v49
      %v72 = vpack.c.bf16 %v52, %v51
      %v73 = vpack.c.bf16 %v54, %v53
      %v74 = vpack.c.bf16 %v56, %v55
      %v75 = vpack.c.bf16 %v58, %v57
      %v76 = vpack.c.bf16 %v60, %v59
      %v77 = vld [vmem:[%s4] sm:$0xf]
      %v78 = vld [vmem:[%s4 + $0x4] sm:$0xf]
      %v79 = vld [vmem:[%s4 + $0x8] sm:$0xf]
      %v80 = vld [vmem:[%s4 + $0xc] sm:$0xf]
      %v81 = vld [vmem:[%s5] sm:$0x1]
      %v83 = vperm.slane %v81, 0
      %v89 = vunpack.c.l.b16 %v77
      %v90 = vunpack.c.l.b16 %v78
      %v91 = vunpack.c.l.b16 %v79
      %v92 = vunpack.c.l.b16 %v80
      %v93 = vpack.c.b16 %v90, %v89
      %v94 = vpack.c.b16 %v92, %v91
      %vm95 = vcmask 261120
      %v97 = vsel %vm95, %v61, 0
      %v100 = vsel %vm95, %v62, 0
      %v103 = vsel %vm95, %v63, 0
      %v106 = vsel %vm95, %v64, 0
      %v109 = vsel %vm95, %v65, 0
      %v112 = vsel %vm95, %v66, 0
      %v115 = vsel %vm95, %v67, 0
      %v118 = vsel %vm95, %v68, 0
      %v121 = vsel %vm95, %v69, 0
      %v124 = vsel %vm95, %v70, 0
      %v127 = vsel %vm95, %v71, 0
      %v130 = vsel %vm95, %v72, 0
      %v133 = vsel %vm95, %v73, 0
      %v136 = vsel %vm95, %v74, 0
      %v139 = vsel %vm95, %v75, 0
      %v142 = vsel %vm95, %v76, 0
      %v145 = vsel %vm95, %v93, 0
      %v148 = vsel %vm95, %v94, 0
      %150 = vmatpush.bf16.xpose.msra.mxu0 0
      %151 = vmatpush.bf16.xpose.msra.mxu0 0
      %152 = vmatpush.bf16.xpose.msra.mxu0 0
      %153 = vmatpush.bf16.xpose.msra.mxu0 0
      %154 = vmatpush.bf16.xpose.msra.mxu0 0
      %155 = vmatpush.bf16.xpose.msra.mxu0 0
      %156 = vmatpush.bf16.xpose.msra.mxu0 %v148
      %157 = vmatpush.bf16.xpose.msra.mxu0 %v145
      %158 = vmatmul.bf16.gmra.mxu0 %v97
      %v159 = vpop.f32.mrf.mxu0
      %v160 = vadd.f32 %v83, %v159
      %v161 = vpop.f32.mrf.mxu0
      %v162 = vadd.f32 %v83, %v161
      %163 = vmatmul.bf16.gmra.mxu0 %v100
      %v164 = vpop.f32.mrf.mxu0
      %v165 = vadd.f32 %v83, %v164
      %v166 = vpop.f32.mrf.mxu0
      %v167 = vadd.f32 %v83, %v166
      %168 = vmatmul.bf16.gmra.mxu0 %v103
      %v169 = vpop.f32.mrf.mxu0
      %v170 = vadd.f32 %v83, %v169
      %v171 = vpop.f32.mrf.mxu0
      %v172 = vadd.f32 %v83, %v171
      %173 = vmatmul.bf16.gmra.mxu0 %v106
      %v174 = vpop.f32.mrf.mxu0
      %v175 = vadd.f32 %v83, %v174
      %v176 = vpop.f32.mrf.mxu0
      %v177 = vadd.f32 %v83, %v176
      %178 = vmatmul.bf16.gmra.mxu0 %v109
      %v179 = vpop.f32.mrf.mxu0
      %v180 = vadd.f32 %v83, %v179
      %v181 = vpop.f32.mrf.mxu0
      %v182 = vadd.f32 %v83, %v181
      %183 = vmatmul.bf16.gmra.mxu0 %v112
      %v184 = vpop.f32.mrf.mxu0
      %v185 = vadd.f32 %v83, %v184
      %v186 = vpop.f32.mrf.mxu0
      %v187 = vadd.f32 %v83, %v186
      %188 = vmatmul.bf16.gmra.mxu0 %v115
      %v189 = vpop.f32.mrf.mxu0
      %v190 = vadd.f32 %v83, %v189
      %v191 = vpop.f32.mrf.mxu0
      %v192 = vadd.f32 %v83, %v191
      %193 = vmatmul.bf16.gmra.mxu0 %v118
      %v194 = vpop.f32.mrf.mxu0
      %v195 = vadd.f32 %v83, %v194
      %v196 = vpop.f32.mrf.mxu0
      %v197 = vadd.f32 %v83, %v196
      %198 = vmatmul.bf16.gmra.mxu0 %v121
      %v199 = vpop.f32.mrf.mxu0
      %v200 = vadd.f32 %v83, %v199
      %v201 = vpop.f32.mrf.mxu0
      %v202 = vadd.f32 %v83, %v201
      %203 = vmatmul.bf16.gmra.mxu0 %v124
      %v204 = vpop.f32.mrf.mxu0
      %v205 = vadd.f32 %v83, %v204
      %v206 = vpop.f32.mrf.mxu0
      %v207 = vadd.f32 %v83, %v206
      %208 = vmatmul.bf16.gmra.mxu0 %v127
      %v209 = vpop.f32.mrf.mxu0
      %v210 = vadd.f32 %v83, %v209
      %v211 = vpop.f32.mrf.mxu0
      %v212 = vadd.f32 %v83, %v211
      %213 = vmatmul.bf16.gmra.mxu0 %v130
      %v214 = vpop.f32.mrf.mxu0
      %v215 = vadd.f32 %v83, %v214
      %v216 = vpop.f32.mrf.mxu0
      %v217 = vadd.f32 %v83, %v216
      %218 = vmatmul.bf16.gmra.mxu0 %v133
      %v219 = vpop.f32.mrf.mxu0
      %v220 = vadd.f32 %v83, %v219
      %v221 = vpop.f32.mrf.mxu0
      %v222 = vadd.f32 %v83, %v221
      %223 = vmatmul.bf16.gmra.mxu0 %v136
      %v224 = vpop.f32.mrf.mxu0
      %v225 = vadd.f32 %v83, %v224
      %v226 = vpop.f32.mrf.mxu0
      %v227 = vadd.f32 %v83, %v226
      %228 = vmatmul.bf16.gmra.mxu0 %v139
      %v229 = vpop.f32.mrf.mxu0
      %v230 = vadd.f32 %v83, %v229
      %v231 = vpop.f32.mrf.mxu0
      %v232 = vadd.f32 %v83, %v231
      %233 = vmatmul.bf16.gmra.mxu0 %v142
      %v234 = vpop.f32.mrf.mxu0
      %v235 = vadd.f32 %v83, %v234
      %v236 = vpop.f32.mrf.mxu0
      %v237 = vadd.f32 %v83, %v236
      %238 = vdwg.mxu0
      %v239 = vpack.c.bf16 %v160, %v160
      %v240 = vpack.c.bf16 %v162, %v162
      %v241 = vpack.c.bf16 %v165, %v165
      %v242 = vpack.c.bf16 %v167, %v167
      %v243 = vpack.c.bf16 %v170, %v170
      %v244 = vpack.c.bf16 %v172, %v172
      %v245 = vpack.c.bf16 %v175, %v175
      %v246 = vpack.c.bf16 %v177, %v177
      %v247 = vpack.c.bf16 %v180, %v180
      %v248 = vpack.c.bf16 %v182, %v182
      %v249 = vpack.c.bf16 %v185, %v185
      %v250 = vpack.c.bf16 %v187, %v187
      %v251 = vpack.c.bf16 %v190, %v190
      %v252 = vpack.c.bf16 %v192, %v192
      %v253 = vpack.c.bf16 %v195, %v195
      %v254 = vpack.c.bf16 %v197, %v197
      %v255 = vpack.c.bf16 %v200, %v200
      %v256 = vpack.c.bf16 %v202, %v202
      %v257 = vpack.c.bf16 %v205, %v205
      %v258 = vpack.c.bf16 %v207, %v207
      %v259 = vpack.c.bf16 %v210, %v210
      %v260 = vpack.c.bf16 %v212, %v212
      %v261 = vpack.c.bf16 %v215, %v215
      %v262 = vpack.c.bf16 %v217, %v217
      %v263 = vpack.c.bf16 %v220, %v220
      %v264 = vpack.c.bf16 %v222, %v222
      %v265 = vpack.c.bf16 %v225, %v225
      %v266 = vpack.c.bf16 %v227, %v227
      %v267 = vpack.c.bf16 %v230, %v230
      %v268 = vpack.c.bf16 %v232, %v232
      %v269 = vpack.c.bf16 %v235, %v235
      %v270 = vpack.c.bf16 %v237, %v237
      %vm271 = vcmask 257024
      %272 = vst.msk [vmem:[#allocation2] sm:$0xf] %vm271, %v239
      %273 = vst.msk [vmem:[#allocation2 + $0x4] sm:$0xf] %vm271, %v240
      %274 = vst.msk [vmem:[#allocation2 + $0x8] sm:$0xf] %vm271, %v241
      %275 = vst.msk [vmem:[#allocation2 + $0xc] sm:$0xf] %vm271, %v242
      %276 = vst.msk [vmem:[#allocation2 + $0x10] sm:$0xf] %vm271, %v243
      %277 = vst.msk [vmem:[#allocation2 + $0x14] sm:$0xf] %vm271, %v244
      %278 = vst.msk [vmem:[#allocation2 + $0x18] sm:$0xf] %vm271, %v245
      %279 = vst.msk [vmem:[#allocation2 + $0x1c] sm:$0xf] %vm271, %v246
      %280 = vst.msk [vmem:[#allocation2 + $0x20] sm:$0xf] %vm271, %v247
      %281 = vst.msk [vmem:[#allocation2 + $0x24] sm:$0xf] %vm271, %v248
      %282 = vst.msk [vmem:[#allocation2 + $0x28] sm:$0xf] %vm271, %v249
      %283 = vst.msk [vmem:[#allocation2 + $0x2c] sm:$0xf] %vm271, %v250
      %284 = vst.msk [vmem:[#allocation2 + $0x30] sm:$0xf] %vm271, %v251
      %285 = vst.msk [vmem:[#allocation2 + $0x34] sm:$0xf] %vm271, %v252
      %286 = vst.msk [vmem:[#allocation2 + $0x38] sm:$0xf] %vm271, %v253
      %287 = vst.msk [vmem:[#allocation2 + $0x3c] sm:$0xf] %vm271, %v254
      %288 = vst.msk [vmem:[#allocation2 + $0x40] sm:$0xf] %vm271, %v255
      %289 = vst.msk [vmem:[#allocation2 + $0x44] sm:$0xf] %vm271, %v256
      %290 = vst.msk [vmem:[#allocation2 + $0x48] sm:$0xf] %vm271, %v257
      %291 = vst.msk [vmem:[#allocation2 + $0x4c] sm:$0xf] %vm271, %v258
      %292 = vst.msk [vmem:[#allocation2 + $0x50] sm:$0xf] %vm271, %v259
      %293 = vst.msk [vmem:[#allocation2 + $0x54] sm:$0xf] %vm271, %v260
      %294 = vst.msk [vmem:[#allocation2 + $0x58] sm:$0xf] %vm271, %v261
      %295 = vst.msk [vmem:[#allocation2 + $0x5c] sm:$0xf] %vm271, %v262
      %296 = vst.msk [vmem:[#allocation2 + $0x60] sm:$0xf] %vm271, %v263
      %297 = vst.msk [vmem:[#allocation2 + $0x64] sm:$0xf] %vm271, %v264
      %298 = vst.msk [vmem:[#allocation2 + $0x68] sm:$0xf] %vm271, %v265
      %299 = vst.msk [vmem:[#allocation2 + $0x6c] sm:$0xf] %vm271, %v266
      %300 = vst.msk [vmem:[#allocation2 + $0x70] sm:$0xf] %vm271, %v267
      %301 = vst.msk [vmem:[#allocation2 + $0x74] sm:$0xf] %vm271, %v268
      %302 = vst.msk [vmem:[#allocation2 + $0x78] sm:$0xf] %vm271, %v269
      %303 = vst.msk [vmem:[#allocation2 + $0x7c] sm:$0xf] %vm271, %v270
    $region29: #{tpu_custom_call.1} parent=1 // pred_fallthru
      _
    %v304 = vld [vmem:[%s0] sm:$0xff]
    %v305 = vld [vmem:[%s0 + $0x8] sm:$0xff]
    %v306 = vpack.c.bf16 %v305, %v304
    %v307 = vld [vmem:[%s2] sm:$0xf]
    %v308 = vld [vmem:[%s2 + $0x4] sm:$0xf]
    %v309 = vld [vmem:[%s2 + $0x8] sm:$0xf]
    %v310 = vld [vmem:[%s2 + $0xc] sm:$0xf]
    %v311 = vld [vmem:[%s3] sm:$0x1]
    %v313 = vperm.slane %v311, 0
    %v319 = vunpack.c.l.b16 %v307
    %v320 = vunpack.c.l.b16 %v308
    %v321 = vunpack.c.l.b16 %v309
    %v322 = vunpack.c.l.b16 %v310
    %v323 = vpack.c.b16 %v320, %v319
    %v324 = vpack.c.b16 %v322, %v321
    %vm325 = vcmask 261120
    %v327 = vsel %vm325, %v306, 0
    %v330 = vsel %vm325, %v323, 0
    %v333 = vsel %vm325, %v324, 0
    %335 = vmatpush.bf16.xpose.msra.mxu0 0
    %336 = vmatpush.bf16.xpose.msra.mxu0 0
    %337 = vmatpush.bf16.xpose.msra.mxu0 0
    %338 = vmatpush.bf16.xpose.msra.mxu0 0
    %339 = vmatpush.bf16.xpose.msra.mxu0 0
    %340 = vmatpush.bf16.xpose.msra.mxu0 0
    %341 = vmatpush.bf16.xpose.msra.mxu0 %v333
    %342 = vmatpush.bf16.xpose.msra.mxu0 %v330
    %343 = vmatmul.bf16.gmra.mxu0 %v327
    %v344 = vpop.f32.mrf.mxu0
    %v345 = vadd.f32 %v313, %v344
    %v346 = vpop.f32.mrf.mxu0
    %v347 = vadd.f32 %v313, %v346
    %348 = vdwg.mxu0
    %v349 = vpack.c.bf16 %v345, %v345
    %v350 = vpack.c.bf16 %v347, %v347
    %v351 = vld [vmem:[#allocation2] sm:$0xf]
    %v352 = vld [vmem:[#allocation2 + $0x4] sm:$0xf]
    %v353 = vld [vmem:[#allocation2 + $0x8] sm:$0xf]
    %v354 = vld [vmem:[#allocation2 + $0xc] sm:$0xf]
    %v355 = vld [vmem:[#allocation2 + $0x10] sm:$0xf]
    %v356 = vld [vmem:[#allocation2 + $0x14] sm:$0xf]
    %v357 = vld [vmem:[#allocation2 + $0x18] sm:$0xf]
    %v358 = vld [vmem:[#allocation2 + $0x1c] sm:$0xf]
    %v359 = vld [vmem:[#allocation2 + $0x20] sm:$0xf]
    %v360 = vld [vmem:[#allocation2 + $0x24] sm:$0xf]
    %v361 = vld [vmem:[#allocation2 + $0x28] sm:$0xf]
    %v362 = vld [vmem:[#allocation2 + $0x2c] sm:$0xf]
    %v363 = vld [vmem:[#allocation2 + $0x30] sm:$0xf]
    %v364 = vld [vmem:[#allocation2 + $0x34] sm:$0xf]
    %v365 = vld [vmem:[#allocation2 + $0x38] sm:$0xf]
    %v366 = vld [vmem:[#allocation2 + $0x3c] sm:$0xf]
    %v367 = vld [vmem:[#allocation2 + $0x40] sm:$0xf]
    %v368 = vld [vmem:[#allocation2 + $0x44] sm:$0xf]
    %v369 = vld [vmem:[#allocation2 + $0x48] sm:$0xf]
    %v370 = vld [vmem:[#allocation2 + $0x4c] sm:$0xf]
    %v371 = vld [vmem:[#allocation2 + $0x50] sm:$0xf]
    %v372 = vld [vmem:[#allocation2 + $0x54] sm:$0xf]
    %v373 = vld [vmem:[#allocation2 + $0x58] sm:$0xf]
    %v374 = vld [vmem:[#allocation2 + $0x5c] sm:$0xf]
    %v375 = vld [vmem:[#allocation2 + $0x60] sm:$0xf]
    %v376 = vld [vmem:[#allocation2 + $0x64] sm:$0xf]
    %v377 = vld [vmem:[#allocation2 + $0x68] sm:$0xf]
    %v378 = vld [vmem:[#allocation2 + $0x6c] sm:$0xf]
    %v379 = vld [vmem:[#allocation2 + $0x70] sm:$0xf]
    %v380 = vld [vmem:[#allocation2 + $0x74] sm:$0xf]
    %v381 = vld [vmem:[#allocation2 + $0x78] sm:$0xf]
    %v382 = vld [vmem:[#allocation2 + $0x7c] sm:$0xf]
    %v399 = vunpack.c.l.b16 %v351
    %v400 = vunpack.c.l.b16 %v352
    %v401 = vunpack.c.l.b16 %v353
    %v402 = vunpack.c.l.b16 %v354
    %v403 = vunpack.c.l.b16 %v355
    %v404 = vunpack.c.l.b16 %v356
    %v405 = vunpack.c.l.b16 %v357
    %v406 = vunpack.c.l.b16 %v358
    %v407 = vunpack.c.l.b16 %v359
    %v408 = vunpack.c.l.b16 %v360
    %v409 = vunpack.c.l.b16 %v361
    %v410 = vunpack.c.l.b16 %v362
    %v411 = vunpack.c.l.b16 %v363
    %v412 = vunpack.c.l.b16 %v364
    %v413 = vunpack.c.l.b16 %v365
    %v414 = vunpack.c.l.b16 %v366
    %v415 = vpack.c.b16 %v400, %v399
    %v416 = vpack.c.b16 %v402, %v401
    %v417 = vpack.c.b16 %v404, %v403
    %v418 = vpack.c.b16 %v406, %v405
    %v419 = vpack.c.b16 %v408, %v407
    %v420 = vpack.c.b16 %v410, %v409
    %v421 = vpack.c.b16 %v412, %v411
    %v422 = vpack.c.b16 %v414, %v413
    %v424 = vsel %vm325, %v349, 0
    %v427 = vsel %vm325, %v415, 0
    %v430 = vsel %vm325, %v416, 0
    %v433 = vsel %vm325, %v417, 0
    %v436 = vsel %vm325, %v418, 0
    %v439 = vsel %vm325, %v419, 0
    %v442 = vsel %vm325, %v420, 0
    %v445 = vsel %vm325, %v421, 0
    %v448 = vsel %vm325, %v422, 0
    %450 = vmatpush.bf16.xpose.msra.mxu0 %v448
    %451 = vmatpush.bf16.xpose.msra.mxu0 %v445
    %452 = vmatpush.bf16.xpose.msra.mxu0 %v442
    %453 = vmatpush.bf16.xpose.msra.mxu0 %v439
    %454 = vmatpush.bf16.xpose.msra.mxu0 %v436
    %455 = vmatpush.bf16.xpose.msra.mxu0 %v433
    %456 = vmatpush.bf16.xpose.msra.mxu0 %v430
    %457 = vmatpush.bf16.xpose.msra.mxu0 %v427
    %458 = vmatmul.bf16.gmra.mxu0 %v424
    %v459 = vpop.f32.mrf.mxu0
    %v460 = vadd.f32 0.0, %v459
    %v461 = vpop.f32.mrf.mxu0
    %462 = vdwg.mxu0
    %v479 = vunpack.c.l.b16 %v367
    %v480 = vunpack.c.l.b16 %v368
    %v481 = vunpack.c.l.b16 %v369
    %v482 = vunpack.c.l.b16 %v370
    %v483 = vunpack.c.l.b16 %v371
    %v484 = vunpack.c.l.b16 %v372
    %v485 = vunpack.c.l.b16 %v373
    %v486 = vunpack.c.l.b16 %v374
    %v487 = vunpack.c.l.b16 %v375
    %v488 = vunpack.c.l.b16 %v376
    %v489 = vunpack.c.l.b16 %v377
    %v490 = vunpack.c.l.b16 %v378
    %v491 = vunpack.c.l.b16 %v379
    %v492 = vunpack.c.l.b16 %v380
    %v493 = vunpack.c.l.b16 %v381
    %v494 = vunpack.c.l.b16 %v382
    %v495 = vpack.c.b16 %v480, %v479
    %v496 = vpack.c.b16 %v482, %v481
    %v497 = vpack.c.b16 %v484, %v483
    %v498 = vpack.c.b16 %v486, %v485
    %v499 = vpack.c.b16 %v488, %v487
    %v500 = vpack.c.b16 %v490, %v489
    %v501 = vpack.c.b16 %v492, %v491
    %v502 = vpack.c.b16 %v494, %v493
    %v504 = vsel %vm325, %v350, 0
    %v507 = vsel %vm325, %v495, 0
    %v510 = vsel %vm325, %v496, 0
    %v513 = vsel %vm325, %v497, 0
    %v516 = vsel %vm325, %v498, 0
    %v519 = vsel %vm325, %v499, 0
    %v522 = vsel %vm325, %v500, 0
    %v525 = vsel %vm325, %v501, 0
    %v528 = vsel %vm325, %v502, 0
    %530 = vmatpush.bf16.xpose.msra.mxu0 %v528
    %531 = vmatpush.bf16.xpose.msra.mxu0 %v525
    %532 = vmatpush.bf16.xpose.msra.mxu0 %v522
    %533 = vmatpush.bf16.xpose.msra.mxu0 %v519
    %534 = vmatpush.bf16.xpose.msra.mxu0 %v516
    %535 = vmatpush.bf16.xpose.msra.mxu0 %v513
    %536 = vmatpush.bf16.xpose.msra.mxu0 %v510
    %537 = vmatpush.bf16.xpose.msra.mxu0 %v507
    %538 = vmatmul.bf16.gmra.mxu0 %v504
    %v539 = vpop.f32.mrf.mxu0
    %v540 = vadd.f32 0.0, %v539
    %v541 = vpop.f32.mrf.mxu0
    %542 = vdwg.mxu0
    %543 = vst [vmem:[#allocation3] sm:$0xff] %v460
    %544 = vst [vmem:[#allocation3 + $0x8] sm:$0xff] %v540
    // Predicated region
    $region30: #{tpu_custom_call.1} parent=1 // pred_check
      _
    $region31: #{tpu_custom_call.1} parent=1 // pred_check_branch
      %546 = sbr.rel (0) target = $region33
    $region32: #{tpu_custom_call.1} parent=1 // pred_region
      %548 = vsyncadd [#allocation4], 0
      %s549 = sshll.u32 [#allocation3], 4
      %s550 = int_to_ptr.vmem [resolvable:$true] %s549
      %s551 = sshll.u32 %s6, 4
      %s552 = int_to_ptr.hbm [resolvable:$true] %s551
      %557 = dma.vmem_to_hbm [thread:$0]  %s550, 256, %s552, [#allocation4], 128, 128, 8
    $region33: #{tpu_custom_call.1} parent=1 // pred_fallthru
      _
    // Predicated region
    $region34: #{tpu_custom_call.1} parent=1 // pred_check
      _
    $region35: #{tpu_custom_call.1} parent=1 // pred_check_branch
      %559 = sbr.rel (0) target = $region37
    $region36: #{tpu_custom_call.1} parent=1 // pred_region
      %561 = dma.done [#allocation4], 256
    $region37: #{tpu_custom_call.1} parent=1 // pred_fallthru
      _
    %562 = vsyncpa [#allocation4], 1

</llo_original>
